<compile_context>
chip_gen: v6e
topology: v6e:2x2x1
jax: 0.10.0
libtpu: 0.0.40
codegen_flags: <defaults>
</compile_context>

<pallas_src>
import jax
import jax.numpy as jnp
from jax.experimental import pallas as pl
from jax.experimental.pallas import tpu as pltpu


def _round_up(x: int, m: int) -> int:
    return ((x + m - 1) // m) * m


def _padded_vmem_bytes(shape2d, dtype) -> int:
    # VMEM tiles pad the last dim to 128 lanes and the second-last to 8 sublanes.
    r, c = shape2d
    return _round_up(max(int(r), 1), 8) * _round_up(max(int(c), 1), 128) * jnp.dtype(dtype).itemsize


def _node_projection_kernel(x_ref, w_ref, b_ref, o_ref):
    # x_ref: [TN, H] f32   w_ref: [H, OUT] f32   b_ref: [1, OUT] f32   o_ref: [TN, OUT] f32
    acc = jnp.dot(x_ref[...], w_ref[...], preferred_element_type=jnp.float32)
    o_ref[...] = (acc + b_ref[...]).astype(o_ref.dtype)


def _project_nodes(x, w, b, *, block_n: int = 4096):
    """out[n, :] = x[n, :] @ w + b   (tiled Pallas matmul over the node axis)."""
    x = x.astype(jnp.float32)
    w = w.astype(jnp.float32)
    b = b.astype(jnp.float32).reshape(1, -1)

    N, H = x.shape
    out_dim = w.shape[1]

    # Node-tile size: full extent for small N; otherwise a multiple of 8 that
    # keeps >= ~4 grid steps (v7x megacore sharding + pipeline overlap).
    if N <= block_n:
        tn = N
    else:
        tn = min(block_n, _round_up(pl.cdiv(N, 4), 8))

    def footprint(t):
        return (
            2 * _padded_vmem_bytes((t, H), jnp.float32)          # x tile, double-buffered
            + 2 * _padded_vmem_bytes((t, out_dim), jnp.float32)  # out tile, double-buffered
            + 2 * _padded_vmem_bytes((H, out_dim), jnp.float32)  # weight (resident)
            + 2 * _padded_vmem_bytes((1, out_dim), jnp.float32)  # bias   (resident)
        )

    # Stay well inside the 32 MiB scoped-VMEM default (v7x physical = 64 MiB).
    max_vmem = 24 << 20
    while tn > 8 and footprint(tn) > max_vmem:
        tn = max(8, _round_up(tn // 2, 8))

    vmem_limit = int(min(max(2 * footprint(tn), 8 << 20), 32 << 20))

    cost = pl.CostEstimate(
        flops=2 * N * H * out_dim,
        transcendentals=0,
        bytes_accessed=int(4 * (N * H + H * out_dim + N * out_dim + out_dim)),
    )

    return pl.pallas_call(
        _node_projection_kernel,
        out_shape=jax.ShapeDtypeStruct((N, out_dim), jnp.float32),
        grid_spec=pl.GridSpec(
            grid=(pl.cdiv(N, tn),),
            in_specs=[
                pl.BlockSpec((tn, H), lambda i: (i, 0)),         # node-feature tile
                pl.BlockSpec((H, out_dim), lambda i: (0, 0)),    # weight (resident)
                pl.BlockSpec((1, out_dim), lambda i: (0, 0)),    # bias   (resident)
            ],
            out_specs=pl.BlockSpec((tn, out_dim), lambda i: (i, 0)),
        ),
        compiler_params=pltpu.CompilerParams(
            dimension_semantics=("parallel",),   # node tiles are independent
            vmem_limit_bytes=vmem_limit,
        ),
        cost_estimate=cost,
    )(x, w, b)


def edge_decoder_forward(x_dict, edge_label_index, params, target, *, block_n: int = 4096):
    """JAX/Pallas equivalent of EdgeDecoder.forward.

    x_dict:           dict[node_type -> [N, H] float array]
    edge_label_index: [2, E] int32 array of (src_row, dst_row) indices
    params:           {'weight': [out_dim, 2H], 'bias': [out_dim]}  (nn.Linear convention)
    target:           (src_type, rel, dst_type)
    """
    rel_src, rel_dst = target[0], target[-1]
    x_src = x_dict[rel_src]
    x_dst = x_dict[rel_dst]
    h_src_dim = x_src.shape[1]
    h_dst_dim = x_dst.shape[1]

    out_dim = params["weight"].shape[0]
    w_t = params["weight"].T.astype(jnp.float32)              # [2H, out_dim]
    w_src = w_t[:h_src_dim]                                    # [H, out_dim]
    w_dst = w_t[h_src_dim:h_src_dim + h_dst_dim]               # [H, out_dim]
    bias = params["bias"].astype(jnp.float32).reshape(1, out_dim)
    zero_bias = jnp.zeros_like(bias)

    # Node-level projections (Pallas kernels). Bias folded into the src half.
    s_src = _project_nodes(x_src, w_src, bias, block_n=block_n)      # [N_src, out_dim]
    s_dst = _project_nodes(x_dst, w_dst, zero_bias, block_n=block_n) # [N_dst, out_dim]

    # Per-edge stage: gather of out_dim-wide rows + VPU add (pure indexing
    # glue, left to XLA; rows are only out_dim*4 bytes).
    out = (
        jnp.take(s_src, edge_label_index[0], axis=0)
        + jnp.take(s_dst, edge_label_index[1], axis=0)
    )
    return out


def init_edge_decoder_params(key, hidden_dim, out_dim):
    """Deterministic init matching nn.Linear(2*hidden_dim, out_dim) shapes."""
    k_w, k_b = jax.random.split(key)
    fan_in = 2 * hidden_dim
    bound = 1.0 / jnp.sqrt(fan_in)
    weight = jax.random.uniform(
        k_w, (out_dim, 2 * hidden_dim), jnp.float32, -bound, bound
    )
    bias = jax.random.uniform(k_b, (out_dim,), jnp.float32, -bound, bound)
    return {"weight": weight, "bias": bias}


if __name__ == "__main__":
    key = jax.random.PRNGKey(0)
    k_params, k_src, k_dst, k_idx0, k_idx1 = jax.random.split(key, 5)

    hidden_dim = 32
    out_dim = 1
    n_src_nodes = 16
    n_dst_nodes = 20
    num_edges = 8
    target = ("user", "rates", "item")

    params = init_edge_decoder_params(k_params, hidden_dim, out_dim)
    x_dict = {
        "user": jax.random.normal(k_src, (n_src_nodes, hidden_dim), jnp.float32),
        "item": jax.random.normal(k_dst, (n_dst_nodes, hidden_dim), jnp.float32),
    }
    edge_label_index = jnp.stack(
        [
            jax.random.randint(k_idx0, (num_edges,), 0, n_src_nodes),
            jax.random.randint(k_idx1, (num_edges,), 0, n_dst_nodes),
        ],
        axis=0,
    ).astype(jnp.int32)

    out = jax.block_until_ready(
        edge_decoder_forward(x_dict, edge_label_index, params, target)
    )
    assert out.shape == (num_edges, out_dim)

    # f32 PyTorch-equivalent reference (node precompute is algebraically exact;
    # tolerance only covers MXU f32-matmul accumulation differences).
    h_src = x_dict["user"][edge_label_index[0]]
    h_dst = x_dict["item"][edge_label_index[1]]
    ref = jnp.concatenate([h_src, h_dst], axis=1) @ params["weight"].T + params["bias"]
    assert jnp.allclose(out, ref, atol=2e-3, rtol=2e-3), "mismatch vs f32 reference"

    # Exercise the tiled path (grid > 1, ragged last node tile) with a tiny block.
    out_tiled = jax.block_until_ready(
        edge_decoder_forward(x_dict, edge_label_index, params, target, block_n=8)
    )
    assert jnp.allclose(out_tiled, ref, atol=2e-3, rtol=2e-3), "mismatch (tiled path)"

    print("KERNEL_OK")
</pallas_src>

<mosaic_0001>
module attributes {stable_mosaic.version = 11 : i64} {
  func.func @_node_projection_kernel(%arg0: i32, %arg1: memref<16x32xf32, #tpu.memory_space<vmem>>, %arg2: memref<32x1xf32, #tpu.memory_space<vmem>>, %arg3: memref<1x1xf32, #tpu.memory_space<vmem>>, %arg4: memref<16x1xf32, #tpu.memory_space<vmem>>) attributes {dimension_semantics = [#tpu.dimension_semantics<parallel>], iteration_bounds = array<i64: 1>, scalar_prefetch = 0 : i64, scratch_operands = 0 : i64, tpu.core_type = #tpu.core_type<tc>, window_params = [{transform_indices = @transform_0, window_bounds = array<i64: 16, 32>}, {pipeline_mode = #tpu.pipeline_mode<synchronous>, transform_indices = @transform_1, window_bounds = array<i64: 32, 1>}, {pipeline_mode = #tpu.pipeline_mode<synchronous>, transform_indices = @transform_2, window_bounds = array<i64: 1, 1>}, {transform_indices = @transform_3, window_bounds = array<i64: 16, 1>}]} {
    %c0 = arith.constant 0 : index
    %c0_0 = arith.constant 0 : index
    %0 = vector.load %arg1[%c0, %c0_0] : memref<16x32xf32, #tpu.memory_space<vmem>>, vector<16x32xf32>
    %c0_1 = arith.constant 0 : index
    %c0_2 = arith.constant 0 : index
    %1 = vector.load %arg2[%c0_1, %c0_2] : memref<32x1xf32, #tpu.memory_space<vmem>>, vector<32x1xf32>
    %cst = arith.constant dense<0.000000e+00> : vector<16x1xf32>
    %2 = tpu.matmul %0, %1, %cst {dimension_numbers = #tpu.dot_dimension_numbers<[1], [0], [0], [1], [0, 0, 1, 1], [], []>} : vector<16x32xf32>, vector<32x1xf32>, vector<16x1xf32> -> vector<16x1xf32>
    %c0_3 = arith.constant 0 : index
    %c0_4 = arith.constant 0 : index
    %3 = vector.load %arg3[%c0_3, %c0_4] : memref<1x1xf32, #tpu.memory_space<vmem>>, vector<1x1xf32>
    %4 = vector.broadcast %3 : vector<1x1xf32> to vector<16x1xf32>
    %5 = arith.addf %2, %4 : vector<16x1xf32>
    %c0_5 = arith.constant 0 : index
    %c0_6 = arith.constant 0 : index
    %6 = vector.load %arg4[%c0_5, %c0_6] : memref<16x1xf32, #tpu.memory_space<vmem>>, vector<16x1xf32>
    tpu.vector_store %arg4[%c0_5, %c0_6], %5 {strides = array<i32>} : memref<16x1xf32, #tpu.memory_space<vmem>>, vector<16x1xf32>,
    return
  }
  func.func @transform_0(%arg0: i32) -> (i32, i32) {
    %c0_i32 = arith.constant 0 : i32
    %c0_i32_0 = arith.constant 0 : i32
    return %arg0, %c0_i32 : i32, i32
  }
  func.func @transform_1(%arg0: i32) -> (i32, i32) {
    %c0_i32 = arith.constant 0 : i32
    %c0_i32_0 = arith.constant 0 : i32
    %c0_i32_1 = arith.constant 0 : i32
    return %c0_i32, %c0_i32_0 : i32, i32
  }
  func.func @transform_2(%arg0: i32) -> (i32, i32) {
    %c0_i32 = arith.constant 0 : i32
    %c0_i32_0 = arith.constant 0 : i32
    %c0_i32_1 = arith.constant 0 : i32
    return %c0_i32, %c0_i32_0 : i32, i32
  }
  func.func @transform_3(%arg0: i32) -> (i32, i32) {
    %c0_i32 = arith.constant 0 : i32
    %c0_i32_0 = arith.constant 0 : i32
    return %arg0, %c0_i32 : i32, i32
  }
}

</mosaic_0001>

<llo_original>
// kernel: tpu_custom_call.1
$region0: #{tpu_custom_call.1}
  #allocation0 [shape = 'u32[]', space=smem, size = 0x4, offset = 0x4, fixed_abs, tag = 'smem constant byte address 0x4 - core index']
  #allocation1 [shape = 'u32[144,128]{1,0:T(1,128)}', space=vmem, size = 0x12000, scoped, tag = 'internal scratch']
  #allocation2 [shape = 'f32[1,1]{1,0:T(1,128)S(1)}', space=vmem, size = 0x200, scoped, tag = 'scoped memory for tpu_custom_call.1']
  %s0 = inlined_call_operand.vmem [shape: f32[16,32], index: 0, kind: input, shape index: {}]
  %s1 = inlined_call_operand.vmem [shape: f32[32,1], index: 1, kind: input, shape index: {}]
  %s2 = inlined_call_operand.<no memory space> [shape: f32[1,1], index: 2, kind: input, shape index: {}]
  %s3 = inlined_call_operand.vmem [shape: f32[16,1], index: 3, kind: output, shape index: {}]
  %s4 = sld [smem:[#allocation0]]
  $region22: #{tpu_custom_call.1} parent=0
    _
  %s6 = ssub.s32 1, %s4
  %s7 = scalar_select 0, %s6, %s4
  %v8 = vstv %s2
  %9 = vst [vmem:[#allocation2] sm:$0x1] %v8
  // Predicated region
  $region2: #{tpu_custom_call.1} parent=0 // pred_check
    _
  $region3: #{tpu_custom_call.1} parent=0 // pred_check_branch
    %11 = sbr.rel (0) target = $region5
  $region4: #{tpu_custom_call.1} parent=0 // pred_region
    _
  $region5: #{tpu_custom_call.1} parent=0 // pred_fallthru
    _
  // Predicated region
  $region6: #{tpu_custom_call.1} parent=0 // pred_check
    _
  $region7: #{tpu_custom_call.1} parent=0 // pred_check_branch
    %13 = sbr.rel (0) target = $region9
  $region8: #{tpu_custom_call.1} parent=0 // pred_region
    _
  $region9: #{tpu_custom_call.1} parent=0 // pred_fallthru
    _
  // Predicated region
  $region10: #{tpu_custom_call.1} parent=0 // pred_check
    _
  $region11: #{tpu_custom_call.1} parent=0 // pred_check_branch
    %15 = sbr.rel (0) target = $region13
  $region12: #{tpu_custom_call.1} parent=0 // pred_region
    _
  $region13: #{tpu_custom_call.1} parent=0 // pred_fallthru
    _
  %v16 = vld [vmem:[%s0] sm:$0xff]
  %v17 = vld [vmem:[%s0 + $0x8] sm:$0xff]
  %v18 = vld [vmem:[%s1] sm:$0xff]
  %v19 = vld [vmem:[%s1 + $0x8] sm:$0xff]
  %v20 = vld [vmem:[%s1 + $0x10] sm:$0xff]
  %v21 = vld [vmem:[%s1 + $0x18] sm:$0xff]
  %v22 = vld [vmem:[#allocation2] sm:$0x1]
  %v24 = vlaneseq
  %v25 = vshrl.u32 %v24, 7
  %v26 = vsub.s32 0, %v25
  %v27 = vrot.slane %v22, %v26
  %vm29 = vcmask 261120
  %v31 = vsel %vm29, %v16, 0
  %v34 = vsel %vm29, %v17, 0
  %36 = vmatprep.subr.mxu0 0.0
  %37 = vmatpush1.msra.mxu0 0.0
  %38 = vmatprep.subr.mxu0 0.0
  %39 = vmatpush1.msra.mxu0 0.0
  %40 = vmatprep.subr.mxu0 0.0
  %41 = vmatpush1.msra.mxu0 0.0
  %42 = vmatprep.subr.mxu0 0.0
  %43 = vmatpush1.msra.mxu0 0.0
  %44 = vmatprep.subr.mxu0 0.0
  %45 = vmatpush1.msra.mxu0 0.0
  %46 = vmatprep.subr.mxu0 0.0
  %47 = vmatpush1.msra.mxu0 0.0
  %48 = vmatprep.subr.mxu0 0.0
  %49 = vmatpush1.msra.mxu0 0.0
  %50 = vmatprep.subr.mxu0 0.0
  %51 = vmatpush1.msra.mxu0 0.0
  %52 = vmatprep.subr.mxu0 0.0
  %53 = vmatpush1.msra.mxu0 0.0
  %54 = vmatprep.subr.mxu0 0.0
  %55 = vmatpush1.msra.mxu0 0.0
  %56 = vmatprep.subr.mxu0 0.0
  %57 = vmatpush1.msra.mxu0 0.0
  %58 = vmatprep.subr.mxu0 0.0
  %59 = vmatpush1.msra.mxu0 0.0
  %60 = vmatprep.subr.mxu0 0.0
  %61 = vmatpush1.msra.mxu0 %v21
  %62 = vmatprep.subr.mxu0 0.0
  %63 = vmatpush1.msra.mxu0 %v20
  %64 = vmatprep.subr.mxu0 0.0
  %65 = vmatpush1.msra.mxu0 %v19
  %66 = vmatprep.subr.mxu0 0.0
  %67 = vmatpush1.msra.mxu0 %v18
  %68 = vmatprep.subr.mxu0 0.0
  %69 = vmatpush2.msra.mxu0 0.0
  %70 = vmatprep.subr.mxu0 0.0
  %71 = vmatpush2.msra.mxu0 0.0
  %72 = vmatprep.subr.mxu0 0.0
  %73 = vmatpush2.msra.mxu0 0.0
  %74 = vmatprep.subr.mxu0 0.0
  %75 = vmatpush2.msra.mxu0 0.0
  %76 = vmatprep.subr.mxu0 0.0
  %77 = vmatpush2.msra.mxu0 0.0
  %78 = vmatprep.subr.mxu0 0.0
  %79 = vmatpush2.msra.mxu0 0.0
  %80 = vmatprep.subr.mxu0 0.0
  %81 = vmatpush2.msra.mxu0 0.0
  %82 = vmatprep.subr.mxu0 0.0
  %83 = vmatpush2.msra.mxu0 0.0
  %84 = vmatprep.subr.mxu0 0.0
  %85 = vmatpush2.msra.mxu0 0.0
  %86 = vmatprep.subr.mxu0 0.0
  %87 = vmatpush2.msra.mxu0 0.0
  %88 = vmatprep.subr.mxu0 0.0
  %89 = vmatpush2.msra.mxu0 0.0
  %90 = vmatprep.subr.mxu0 0.0
  %91 = vmatpush2.msra.mxu0 0.0
  %92 = vmatprep.subr.mxu0 0.0
  %93 = vmatpush2.msra.mxu0 0.0
  %94 = vmatprep.subr.mxu0 0.0
  %95 = vmatpush2.msra.mxu0 0.0
  %96 = vmatprep.subr.mxu0 0.0
  %97 = vmatpush2.msra.mxu0 0.0
  %98 = vmatprep.subr.mxu0 0.0
  %99 = vmatpush2.msra.mxu0 0.0
  %100 = vmatprep.mubr.f32.mxu0 0.0
  %101 = vmatmul.mubr.f32.gmra.mxu0 %v31
  %v102 = vpop.f32.mrf.mxu0
  %v103 = vadd.f32 %v27, %v102
  %v104 = vpop.f32.mrf.mxu0
  %105 = vmatprep.mubr.f32.mxu0 0.0
  %106 = vmatmul.mubr.f32.gmra.mxu0 %v34
  %v107 = vpop.f32.mrf.mxu0
  %v108 = vadd.f32 %v27, %v107
  %v109 = vpop.f32.mrf.mxu0
  %110 = vdwg.mxu0
  %vm111 = vcmask 7168
  %112 = vst.msk [vmem:[%s3] sm:$0xff] %vm111, %v103
  %113 = vst.msk [vmem:[%s3 + $0x8] sm:$0xff] %vm111, %v108
  // Predicated region
  $region14: #{tpu_custom_call.1} parent=0 // pred_check
    _
  $region15: #{tpu_custom_call.1} parent=0 // pred_check_branch
    %115 = sbr.rel (0) target = $region17
  $region16: #{tpu_custom_call.1} parent=0 // pred_region
    _
  $region17: #{tpu_custom_call.1} parent=0 // pred_fallthru
    _
  // Predicated region
  $region18: #{tpu_custom_call.1} parent=0 // pred_check
    _
  $region19: #{tpu_custom_call.1} parent=0 // pred_check_branch
    %117 = sbr.rel (0) target = $region21
  $region20: #{tpu_custom_call.1} parent=0 // pred_region
    _
  $region21: #{tpu_custom_call.1} parent=0 // pred_fallthru
    _

</llo_original>
